<compile_context>
chip_gen: v5e
topology: v5e:2x2
jax: 0.10.0
libtpu: 0.0.40
codegen_flags: <defaults>
</compile_context>

<pallas_src>
import functools

import jax
import jax.numpy as jnp
from jax import lax
from jax.experimental import pallas as pl
from jax.experimental.pallas import tpu as pltpu

_MIB = 1024 * 1024


def _round_up(x, m):
    return ((x + m - 1) // m) * m


def _pick_tile(S, candidates=(512, 256, 128)):
    """Largest candidate tile that divides S; fall back to full S (small seqs)."""
    for t in candidates:
        if t <= S and S % t == 0:
            return t
    return S


def _vmem_budget(working_set_bytes):
    # 2x headroom over the estimated working set, floored at the v5e scoped
    # default (16 MiB) and capped safely below v7x physical VMEM (64 MiB).
    return int(min(max(2 * working_set_bytes, 16 * _MIB), 48 * _MIB))


# --------------------------------------------------------------------------- #
# Stage 1: one-shot fused QKV projection (K/V computed exactly once).
# --------------------------------------------------------------------------- #
def _qkv_proj_kernel(x_ref, w_ref, q_ref, k_ref, v_ref, *, d_pad, acc_dtype):
    # x_ref: [ts, d_in]          row tile of x
    # w_ref: [d_in, 3*d_pad]     fused pre-transposed weights (W_q pre-scaled)
    # q/k/v_ref: [ts, d_pad]     lane-dense projected tiles (compute dtype)
    # Emit the compute dtype directly from the MXU (no separate VPU cast pass).
    proj = jnp.dot(x_ref[...], w_ref[...], preferred_element_type=acc_dtype)
    q_ref[...] = proj[:, :d_pad].astype(q_ref.dtype)
    k_ref[...] = proj[:, d_pad:2 * d_pad].astype(k_ref.dtype)
    v_ref[...] = proj[:, 2 * d_pad:].astype(v_ref.dtype)


# --------------------------------------------------------------------------- #
# Stage 2: flash-style attention (online softmax over kv tiles).
# --------------------------------------------------------------------------- #
def _flash_attn_kernel(q_ref, k_ref, v_ref, o_ref, m_sc, l_sc, acc_sc):
    # q_ref: [tq, d_pad]; k_ref/v_ref: [tk, d_pad]; o_ref: [tq, d_pad] (f32)
    # scratch: m_sc/l_sc: [tq, 1] f32, acc_sc: [tq, d_pad] f32
    kv_i = pl.program_id(1)

    @pl.when(kv_i == 0)
    def _():
        m_sc[...] = jnp.full(m_sc.shape, -jnp.inf, dtype=m_sc.dtype)
        l_sc[...] = jnp.zeros(l_sc.shape, dtype=l_sc.dtype)
        acc_sc[...] = jnp.zeros(acc_sc.shape, dtype=acc_sc.dtype)

    # scores = q . k, contracting the head dims directly (no transposed copy of
    # K).  The 1/sqrt(d_out) scale is already folded into W_q.  f32 accumulate.
    s = lax.dot_general(
        q_ref[...], k_ref[...],
        dimension_numbers=(((1,), (1,)), ((), ())),
        preferred_element_type=jnp.float32)                       # [tq, tk]

    # Numerically stable online softmax, all statistics in f32.
    m_prev = m_sc[...]
    m_new = jnp.maximum(m_prev, jnp.max(s, axis=-1, keepdims=True))
    alpha = jnp.exp(m_prev - m_new)
    p = jnp.exp(s - m_new)                                        # [tq, tk] f32
    l_sc[...] = alpha * l_sc[...] + jnp.sum(p, axis=-1, keepdims=True)
    acc_sc[...] = alpha * acc_sc[...] + jnp.dot(
        p.astype(v_ref.dtype), v_ref[...], preferred_element_type=jnp.float32)
    m_sc[...] = m_new

    @pl.when(kv_i == pl.num_programs(1) - 1)
    def _():
        inv_l = pl.reciprocal(l_sc[...], approx=True)             # EUP slot
        o_ref[...] = (acc_sc[...] * inv_l).astype(o_ref.dtype)


# --------------------------------------------------------------------------- #
# Wrapper.
# --------------------------------------------------------------------------- #
def self_attention_v2(x, w_query, w_key, w_value, *,
                      compute_dtype=jnp.bfloat16, tq=None, tk=None):
    """Forward pass of SelfAttention_v2.

    x: [S, d_in] f32; w_*: [d_out, d_in] f32 (PyTorch nn.Linear weight layout,
    bias=False).  Returns [S, d_out] in x.dtype.
    """
    S, d_in = x.shape
    d_out = w_query.shape[0]
    d_pad = _round_up(d_out, 128)               # lane-dense padded head dim
    scale = 1.0 / (d_out ** 0.5)                # == keys.shape[-1] ** -0.5

    # Wrapper-side layout prep (pure XLA, done once, in f32 before the cast):
    # transpose to [d_in, d_out], fold the softmax scale into W_q, zero-pad
    # d_out -> d_pad, fuse into one [d_in, 3*d_pad] matrix.
    def prep(w, s=1.0):
        wt = (w.astype(jnp.float32) * s).T
        return jnp.pad(wt, ((0, 0), (0, d_pad - d_out)))

    w_fused = jnp.concatenate(
        [prep(w_query, scale), prep(w_key), prep(w_value)], axis=1
    ).astype(compute_dtype)                     # [d_in, 3*d_pad]
    x_c = x.astype(compute_dtype)

    if tq is None:
        tq = _pick_tile(S)
    if tk is None:
        tk = _pick_tile(S)
    assert S % tq == 0 and S % tk == 0, "query/kv tiles must divide S"
    csize = jnp.dtype(compute_dtype).itemsize

    # ---- stage 1: QKV projection, computed exactly once (hoisted out of the
    # per-query-tile attention loop). -----------------------------------------
    ts = _pick_tile(S)
    proj_ws = (2 * ts * d_in * csize            # x tile (double-buffered)
               + 2 * d_in * 3 * d_pad * csize   # fused weights (constant block)
               + 3 * 2 * ts * d_pad * csize     # q/k/v output tiles
               + ts * 3 * d_pad * 4)            # in-kernel projection values
    proj_out_spec = pl.BlockSpec((ts, d_pad), lambda i: (i, 0))
    q_c, k_c, v_c = pl.pallas_call(
        functools.partial(_qkv_proj_kernel, d_pad=d_pad, acc_dtype=compute_dtype),
        out_shape=(jax.ShapeDtypeStruct((S, d_pad), compute_dtype),) * 3,
        grid=(S // ts,),
        in_specs=[
            pl.BlockSpec((ts, d_in), lambda i: (i, 0)),
            # Constant index_map -> fetched once and kept resident.
            # TODO(synk): single-buffer this block via pipeline_mode=pl.Buffered(1)
            # once confirmed available on the deployed jax version.
            pl.BlockSpec((d_in, 3 * d_pad), lambda i: (0, 0)),
        ],
        out_specs=(proj_out_spec,) * 3,
        compiler_params=pltpu.CompilerParams(
            dimension_semantics=("parallel",),
            vmem_limit_bytes=_vmem_budget(proj_ws)),
    )(x_c, w_fused)

    # ---- stage 2: flash-style attention over (query tile, kv tile) grid. ----
    attn_ws = (2 * tq * d_pad * csize           # q tile (double-buffered)
               + 2 * 2 * tk * d_pad * csize     # k, v tiles (double-buffered)
               + 2 * tq * d_pad * 4             # out tile (f32)
               + (tq * d_pad + 2 * tq) * 4      # m/l/acc scratch
               + 2 * tq * tk * 4)               # scores / softmax intermediates
    out_padded = pl.pallas_call(
        _flash_attn_kernel,
        out_shape=jax.ShapeDtypeStruct((S, d_pad), jnp.float32),
        grid=(S // tq, S // tk),
        in_specs=[
            pl.BlockSpec((tq, d_pad), lambda i, j: (i, 0)),   # Q: query tile
            pl.BlockSpec((tk, d_pad), lambda i, j: (j, 0)),   # K: kv tile
            pl.BlockSpec((tk, d_pad), lambda i, j: (j, 0)),   # V: kv tile
        ],
        out_specs=pl.BlockSpec((tq, d_pad), lambda i, j: (i, 0)),
        scratch_shapes=[
            pltpu.VMEM((tq, 1), jnp.float32),      # running max m
            pltpu.VMEM((tq, 1), jnp.float32),      # running denom l
            pltpu.VMEM((tq, d_pad), jnp.float32),  # running context accumulator
        ],
        compiler_params=pltpu.CompilerParams(
            # query-tile axis parallel (2x TC on v7x); kv reduction axis
            # arbitrary (m/l/acc carried across it within one core).
            dimension_semantics=("parallel", "arbitrary"),
            vmem_limit_bytes=_vmem_budget(attn_ws)),
    )(q_c, k_c, v_c)

    # Drop the zero-padded head columns (pure XLA slice).
    return out_padded[:, :d_out].astype(x.dtype)


def _reference(x, wq, wk, wv):
    q = x @ wq.T
    k = x @ wk.T
    v = x @ wv.T
    scores = q @ k.T / jnp.sqrt(jnp.float32(k.shape[-1]))
    w = jax.nn.softmax(scores, axis=-1)
    return w @ v


if __name__ == "__main__":
    # Small shapes consistent with the module: seq=8, d_in=32, d_out=16.
    S, d_in, d_out = 8, 32, 16
    key = jax.random.PRNGKey(0)
    kx, kq, kk, kv = jax.random.split(key, 4)

    x = jax.random.normal(kx, (S, d_in), dtype=jnp.float32)
    # Deterministic Linear-style init (uniform in [-1/sqrt(d_in), 1/sqrt(d_in)]).
    bound = 1.0 / (d_in ** 0.5)
    w_query = jax.random.uniform(kq, (d_out, d_in), jnp.float32, -bound, bound)
    w_key = jax.random.uniform(kk, (d_out, d_in), jnp.float32, -bound, bound)
    w_value = jax.random.uniform(kv, (d_out, d_in), jnp.float32, -bound, bound)

    ref = _reference(x, w_query, w_key, w_value)

    # f32 MXU path (tight tolerance; only the approx reciprocal differs from exact).
    out_f32 = jax.block_until_ready(
        self_attention_v2(x, w_query, w_key, w_value, compute_dtype=jnp.float32))
    assert out_f32.shape == (S, d_out)
    assert jnp.allclose(out_f32, ref, atol=2e-3, rtol=2e-3)

    # bf16-input MXU path (default fast path on v6e/v7x; f32 accumulation + f32 softmax).
    out_bf16 = jax.block_until_ready(
        self_attention_v2(x, w_query, w_key, w_value, compute_dtype=jnp.bfloat16))
    assert out_bf16.shape == (S, d_out)
    assert jnp.allclose(out_bf16, ref, atol=3e-2, rtol=3e-2)

    print("KERNEL_OK")
</pallas_src>

<mosaic_0001>
module attributes {stable_mosaic.version = 11 : i64} {
  func.func @_qkv_proj_kernel(%arg0: i32, %arg1: memref<8x32xf32, #tpu.memory_space<vmem>>, %arg2: memref<32x384xf32, #tpu.memory_space<vmem>>, %arg3: memref<8x128xf32, #tpu.memory_space<vmem>>, %arg4: memref<8x128xf32, #tpu.memory_space<vmem>>, %arg5: memref<8x128xf32, #tpu.memory_space<vmem>>) attributes {dimension_semantics = [#tpu.dimension_semantics<parallel>], iteration_bounds = array<i64: 1>, scalar_prefetch = 0 : i64, scratch_operands = 0 : i64, tpu.core_type = #tpu.core_type<tc>, window_params = [{transform_indices = @transform_0, window_bounds = array<i64: 8, 32>}, {pipeline_mode = #tpu.pipeline_mode<synchronous>, transform_indices = @transform_1, window_bounds = array<i64: 32, 384>}, {transform_indices = @transform_2, window_bounds = array<i64: 8, 128>}, {transform_indices = @transform_3, window_bounds = array<i64: 8, 128>}, {transform_indices = @transform_4, window_bounds = array<i64: 8, 128>}]} {
    %c0 = arith.constant 0 : index
    %c0_0 = arith.constant 0 : index
    %0 = vector.load %arg1[%c0, %c0_0] : memref<8x32xf32, #tpu.memory_space<vmem>>, vector<8x32xf32>
    %c0_1 = arith.constant 0 : index
    %c0_2 = arith.constant 0 : index
    %1 = vector.load %arg2[%c0_1, %c0_2] : memref<32x384xf32, #tpu.memory_space<vmem>>, vector<32x384xf32>
    %cst = arith.constant dense<0.000000e+00> : vector<8x384xf32>
    %2 = tpu.matmul %0, %1, %cst {dimension_numbers = #tpu.dot_dimension_numbers<[1], [0], [0], [1], [0, 0, 1, 1], [], []>} : vector<8x32xf32>, vector<32x384xf32>, vector<8x384xf32> -> vector<8x384xf32>
    %3 = vector.extract_strided_slice %2 {offsets = [0, 0], sizes = [8, 128], strides = [1, 1]} : vector<8x384xf32> to vector<8x128xf32>
    %c0_3 = arith.constant 0 : index
    %c0_4 = arith.constant 0 : index
    %4 = vector.load %arg3[%c0_3, %c0_4] : memref<8x128xf32, #tpu.memory_space<vmem>>, vector<8x128xf32>
    tpu.vector_store %arg3[%c0_3, %c0_4], %3 {strides = array<i32>} : memref<8x128xf32, #tpu.memory_space<vmem>>, vector<8x128xf32>,
    %5 = vector.extract_strided_slice %2 {offsets = [0, 128], sizes = [8, 128], strides = [1, 1]} : vector<8x384xf32> to vector<8x128xf32>
    %c0_5 = arith.constant 0 : index
    %c0_6 = arith.constant 0 : index
    %6 = vector.load %arg4[%c0_5, %c0_6] : memref<8x128xf32, #tpu.memory_space<vmem>>, vector<8x128xf32>
    tpu.vector_store %arg4[%c0_5, %c0_6], %5 {strides = array<i32>} : memref<8x128xf32, #tpu.memory_space<vmem>>, vector<8x128xf32>,
    %7 = vector.extract_strided_slice %2 {offsets = [0, 256], sizes = [8, 128], strides = [1, 1]} : vector<8x384xf32> to vector<8x128xf32>
    %c0_7 = arith.constant 0 : index
    %c0_8 = arith.constant 0 : index
    %8 = vector.load %arg5[%c0_7, %c0_8] : memref<8x128xf32, #tpu.memory_space<vmem>>, vector<8x128xf32>
    tpu.vector_store %arg5[%c0_7, %c0_8], %7 {strides = array<i32>} : memref<8x128xf32, #tpu.memory_space<vmem>>, vector<8x128xf32>,
    return
  }
  func.func @transform_0(%arg0: i32) -> (i32, i32) {
    %c0_i32 = arith.constant 0 : i32
    %c0_i32_0 = arith.constant 0 : i32
    return %arg0, %c0_i32 : i32, i32
  }
  func.func @transform_1(%arg0: i32) -> (i32, i32) {
    %c0_i32 = arith.constant 0 : i32
    %c0_i32_0 = arith.constant 0 : i32
    %c0_i32_1 = arith.constant 0 : i32
    return %c0_i32, %c0_i32_0 : i32, i32
  }
  func.func @transform_2(%arg0: i32) -> (i32, i32) {
    %c0_i32 = arith.constant 0 : i32
    %c0_i32_0 = arith.constant 0 : i32
    return %arg0, %c0_i32 : i32, i32
  }
  func.func @transform_3(%arg0: i32) -> (i32, i32) {
    %c0_i32 = arith.constant 0 : i32
    %c0_i32_0 = arith.constant 0 : i32
    return %arg0, %c0_i32 : i32, i32
  }
  func.func @transform_4(%arg0: i32) -> (i32, i32) {
    %c0_i32 = arith.constant 0 : i32
    %c0_i32_0 = arith.constant 0 : i32
    return %arg0, %c0_i32 : i32, i32
  }
}

</mosaic_0001>

<llo_original>
// kernel: tpu_custom_call.1
$region0: #{tpu_custom_call.1}
  #allocation0 [shape = 'u32[]', space=smem, size = 0x4, offset = 0x4, fixed_abs, tag = 'smem constant byte address 0x4 - core index']
  #allocation1 [shape = 'u32[72,128]{1,0:T(1,128)}', space=vmem, size = 0x9000, scoped, tag = 'internal scratch']
  %s0 = inlined_call_operand.hbm [shape: f32[8,32], index: 0, kind: input, shape index: {}]
  %s1 = inlined_call_operand.hbm [shape: f32[32,384], index: 1, kind: input, shape index: {}]
  %s2 = inlined_call_operand.hbm [shape: f32[8,128], index: 2, kind: output, shape index: {0}]
  %s3 = inlined_call_operand.hbm [shape: f32[8,128], index: 3, kind: output, shape index: {1}]
  %s4 = inlined_call_operand.hbm [shape: f32[8,128], index: 4, kind: output, shape index: {2}]
  %5 = xla_tuple %s2, %s3, %s4
  %s6 = sld [smem:[#allocation0]]
  $region42: #{tpu_custom_call.1} parent=0
    _
  %s8 = ssub.s32 1, %s6
  %s9 = scalar_select 0, %s8, %s6
  $region1: #{tpu_custom_call.1} parent=0
    #allocation2 [shape = 'u8[4096]{0}', space=vmem, size = 0x1000, scoped, tag = 'input window, operand 0, single buffered']
    #allocation3 [shape = 's32[1]{0}', space=sflag, size = 0x4, scoped, tag = 'scoped memory for tpu_custom_call.1']
    #allocation4 [shape = 's32[1]{0}', space=sflag, size = 0x4, scoped, tag = 'scoped memory for tpu_custom_call.1']
    #allocation5 [shape = 'u8[49152]{0}', space=vmem, size = 0xc000, scoped, tag = 'input window, operand 1, single buffered']
    #allocation6 [shape = 's32[1]{0}', space=sflag, size = 0x4, scoped, tag = 'scoped memory for tpu_custom_call.1']
    #allocation7 [shape = 'u8[4096]{0}', space=vmem, size = 0x1000, scoped, tag = 'output window, operand 0, single buffered']
    #allocation8 [shape = 'u8[4096]{0}', space=vmem, size = 0x1000, scoped, tag = 'output window, operand 1, single buffered']
    #allocation9 [shape = 's32[1]{0}', space=sflag, size = 0x4, scoped, tag = 'scoped memory for tpu_custom_call.1']
    #allocation10 [shape = 'u8[4096]{0}', space=vmem, size = 0x1000, scoped, tag = 'output window, operand 2, single buffered']
    %10 = vsyncpa [#allocation3], 0
    %11 = vsyncpa [#allocation6], 0
    %12 = vsyncpa [#allocation4], 0
    %13 = vsyncpa [#allocation9], 0
    // Predicated region
    $region2: #{tpu_custom_call.1} parent=1 // pred_check
      _
    $region3: #{tpu_custom_call.1} parent=1 // pred_check_branch
      %15 = sbr.rel (0) target = $region5
    $region4: #{tpu_custom_call.1} parent=1 // pred_region
      %17 = vsyncadd [#allocation3], 0
      %s19 = sshll.u32 %s0, 4
      %s20 = int_to_ptr.hbm [resolvable:$true] %s19
      %s21 = sshll.u32 [#allocation2], 4
      %s22 = int_to_ptr.vmem [resolvable:$true] %s21
      %24 = dma.hbm_to_vmem [thread:$0]  %s20, 128, %s22, [#allocation3]
    $region5: #{tpu_custom_call.1} parent=1 // pred_fallthru
      _
    // Predicated region
    $region6: #{tpu_custom_call.1} parent=1 // pred_check
      _
    $region7: #{tpu_custom_call.1} parent=1 // pred_check_branch
      %26 = sbr.rel (0) target = $region9
    $region8: #{tpu_custom_call.1} parent=1 // pred_region
      %28 = vsyncadd [#allocation6], 0
      %s29 = sshll.u32 %s1, 4
      %s30 = int_to_ptr.hbm [resolvable:$true] %s29
      %s31 = sshll.u32 [#allocation5], 4
      %s32 = int_to_ptr.vmem [resolvable:$true] %s31
      %37 = dma.hbm_to_vmem [thread:$0]  %s30, 1536, %s32, [#allocation6], 384, 384, 24
    $region9: #{tpu_custom_call.1} parent=1 // pred_fallthru
      _
    // Predicated region
    $region10: #{tpu_custom_call.1} parent=1 // pred_check
      _
    $region11: #{tpu_custom_call.1} parent=1 // pred_check_branch
      %39 = sbr.rel (0) target = $region13
    $region12: #{tpu_custom_call.1} parent=1 // pred_region
      %41 = dma.done [#allocation3], 128
    $region13: #{tpu_custom_call.1} parent=1 // pred_fallthru
      _
    // Predicated region
    $region14: #{tpu_custom_call.1} parent=1 // pred_check
      _
    $region15: #{tpu_custom_call.1} parent=1 // pred_check_branch
      %43 = sbr.rel (0) target = $region17
    $region16: #{tpu_custom_call.1} parent=1 // pred_region
      %45 = dma.done [#allocation6], 1536
    $region17: #{tpu_custom_call.1} parent=1 // pred_fallthru
      _
    %v46 = vld [vmem:[#allocation2] sm:$0xff]
    %v47 = vld [vmem:[#allocation5] sm:$0xff]
    %v48 = vld [vmem:[#allocation5 + $0x8] sm:$0xff]
    %v49 = vld [vmem:[#allocation5 + $0x10] sm:$0xff]
    %v50 = vld [vmem:[#allocation5 + $0x18] sm:$0xff]
    %v51 = vld [vmem:[#allocation5 + $0x20] sm:$0xff]
    %v52 = vld [vmem:[#allocation5 + $0x28] sm:$0xff]
    %v53 = vld [vmem:[#allocation5 + $0x30] sm:$0xff]
    %v54 = vld [vmem:[#allocation5 + $0x38] sm:$0xff]
    %v55 = vld [vmem:[#allocation5 + $0x40] sm:$0xff]
    %v56 = vld [vmem:[#allocation5 + $0x48] sm:$0xff]
    %v57 = vld [vmem:[#allocation5 + $0x50] sm:$0xff]
    %v58 = vld [vmem:[#allocation5 + $0x58] sm:$0xff]
    %vm59 = vcmask 261120
    %v61 = vsel %vm59, %v46, 0
    %63 = vmatpush.msra.mxu0 0.0
    %64 = vmatpush.msra.mxu0 0.0
    %65 = vmatpush.msra.mxu0 0.0
    %66 = vmatpush.msra.mxu0 0.0
    %67 = vmatpush.msra.mxu0 0.0
    %68 = vmatpush.msra.mxu0 0.0
    %69 = vmatpush.msra.mxu0 0.0
    %70 = vmatpush.msra.mxu0 0.0
    %71 = vmatpush.msra.mxu0 0.0
    %72 = vmatpush.msra.mxu0 0.0
    %73 = vmatpush.msra.mxu0 0.0
    %74 = vmatpush.msra.mxu0 0.0
    %75 = vmatpush.msra.mxu0 %v56
    %76 = vmatpush.msra.mxu0 %v53
    %77 = vmatpush.msra.mxu0 %v50
    %78 = vmatpush.msra.mxu0 %v47
    %79 = vmatmul.f32.gmra.mxu0 %v61
    %v80 = vpop.f32.mrf.mxu0
    %v81 = vadd.f32 0.0, %v80
    %82 = vdwg.mxu0
    %83 = vmatpush.msra.mxu0 0.0
    %84 = vmatpush.msra.mxu0 0.0
    %85 = vmatpush.msra.mxu0 0.0
    %86 = vmatpush.msra.mxu0 0.0
    %87 = vmatpush.msra.mxu0 0.0
    %88 = vmatpush.msra.mxu0 0.0
    %89 = vmatpush.msra.mxu0 0.0
    %90 = vmatpush.msra.mxu0 0.0
    %91 = vmatpush.msra.mxu0 0.0
    %92 = vmatpush.msra.mxu0 0.0
    %93 = vmatpush.msra.mxu0 0.0
    %94 = vmatpush.msra.mxu0 0.0
    %95 = vmatpush.msra.mxu0 %v57
    %96 = vmatpush.msra.mxu0 %v54
    %97 = vmatpush.msra.mxu0 %v51
    %98 = vmatpush.msra.mxu0 %v48
    %99 = vmatmul.f32.gmra.mxu0 %v61
    %v100 = vpop.f32.mrf.mxu0
    %v101 = vadd.f32 0.0, %v100
    %102 = vdwg.mxu0
    %103 = vmatpush.msra.mxu0 0.0
    %104 = vmatpush.msra.mxu0 0.0
    %105 = vmatpush.msra.mxu0 0.0
    %106 = vmatpush.msra.mxu0 0.0
    %107 = vmatpush.msra.mxu0 0.0
    %108 = vmatpush.msra.mxu0 0.0
    %109 = vmatpush.msra.mxu0 0.0
    %110 = vmatpush.msra.mxu0 0.0
    %111 = vmatpush.msra.mxu0 0.0
    %112 = vmatpush.msra.mxu0 0.0
    %113 = vmatpush.msra.mxu0 0.0
    %114 = vmatpush.msra.mxu0 0.0
    %115 = vmatpush.msra.mxu0 %v58
    %116 = vmatpush.msra.mxu0 %v55
    %117 = vmatpush.msra.mxu0 %v52
    %118 = vmatpush.msra.mxu0 %v49
    %119 = vmatmul.f32.gmra.mxu0 %v61
    %v120 = vpop.f32.mrf.mxu0
    %v121 = vadd.f32 0.0, %v120
    %122 = vdwg.mxu0
    %123 = vst [vmem:[#allocation7] sm:$0xff] %v81
    %124 = vst [vmem:[#allocation8] sm:$0xff] %v101
    %125 = vst [vmem:[#allocation10] sm:$0xff] %v121
    // Predicated region
    $region18: #{tpu_custom_call.1} parent=1 // pred_check
      _
    $region19: #{tpu_custom_call.1} parent=1 // pred_check_branch
      %127 = sbr.rel (0) target = $region21
    $region20: #{tpu_custom_call.1} parent=1 // pred_region
      %129 = vsyncadd [#allocation4], 0
      %s131 = sshll.u32 [#allocation7], 4
      %s132 = int_to_ptr.vmem [resolvable:$true] %s131
      %s133 = sshll.u32 %s2, 4
      %s134 = int_to_ptr.hbm [resolvable:$true] %s133
      %136 = dma.vmem_to_hbm [thread:$0]  %s132, 128, %s134, [#allocation4]
    $region21: #{tpu_custom_call.1} parent=1 // pred_fallthru
      _
    // Predicated region
    $region22: #{tpu_custom_call.1} parent=1 // pred_check
      _
    $region23: #{tpu_custom_call.1} parent=1 // pred_check_branch
      %138 = sbr.rel (0) target = $region25
    $region24: #{tpu_custom_call.1} parent=1 // pred_region
      %140 = vsyncadd [#allocation9], 0
      %s142 = sshll.u32 [#allocation8], 4
      %s143 = int_to_ptr.vmem [resolvable:$true] %s142
      %s144 = sshll.u32 %s3, 4
      %s145 = int_to_ptr.hbm [resolvable:$true] %s144
      %147 = dma.vmem_to_hbm [thread:$0]  %s143, 128, %s145, [#allocation9]
    $region25: #{tpu_custom_call.1} parent=1 // pred_fallthru
      _
    // Predicated region
    $region26: #{tpu_custom_call.1} parent=1 // pred_check
      _
    $region27: #{tpu_custom_call.1} parent=1 // pred_check_branch
      %149 = sbr.rel (0) target = $region29
    $region28: #{tpu_custom_call.1} parent=1 // pred_region
      %151 = vsyncadd [#allocation9], 0
      %s153 = sshll.u32 [#allocation10], 4
      %s154 = int_to_ptr.vmem [resolvable:$true] %s153
      %s155 = sshll.u32 %s4, 4
      %s156 = int_to_ptr.hbm [resolvable:$true] %s155
      %158 = dma.vmem_to_hbm [thread:$0]  %s154, 128, %s156, [#allocation9]
    $region29: #{tpu_custom_call.1} parent=1 // pred_fallthru
      _
    // Predicated region
    $region30: #{tpu_custom_call.1} parent=1 // pred_check
      _
    $region31: #{tpu_custom_call.1} parent=1 // pred_check_branch
      %160 = sbr.rel (0) target = $region33
    $region32: #{tpu_custom_call.1} parent=1 // pred_region
      %162 = dma.done [#allocation4], 128
    $region33: #{tpu_custom_call.1} parent=1 // pred_fallthru
      _
    // Predicated region
    $region34: #{tpu_custom_call.1} parent=1 // pred_check
      _
    $region35: #{tpu_custom_call.1} parent=1 // pred_check_branch
      %164 = sbr.rel (0) target = $region37
    $region36: #{tpu_custom_call.1} parent=1 // pred_region
      %166 = dma.done [#allocation9], 128
    $region37: #{tpu_custom_call.1} parent=1 // pred_fallthru
      _
    // Predicated region
    $region38: #{tpu_custom_call.1} parent=1 // pred_check
      _
    $region39: #{tpu_custom_call.1} parent=1 // pred_check_branch
      %168 = sbr.rel (0) target = $region41
    $region40: #{tpu_custom_call.1} parent=1 // pred_region
      %170 = dma.done [#allocation9], 128
    $region41: #{tpu_custom_call.1} parent=1 // pred_fallthru
      _
    %171 = vsyncpa [#allocation3], 1
    %172 = vsyncpa [#allocation6], 1
    %173 = vsyncpa [#allocation4], 1
    %174 = vsyncpa [#allocation9], 1

</llo_original>
